<compile_context>
chip_gen: v6e
topology: v6e:2x2x1
jax: 0.10.0
libtpu: 0.0.40
codegen_flags: <defaults>
</compile_context>

<pallas_src>
import functools
import math

import jax
import jax.numpy as jnp
from jax.experimental import pallas as pl
from jax.experimental.pallas import tpu as pltpu

_LANE = 128
_MAX_WIDTH = 8192                      # widest lane width tried for the flattened slab
_TARGET_BLOCK_BYTES = 4 * 1024 * 1024  # ~4 MiB per operand block (kernel is DMA-bound)
_SMALL_N = 8192                        # below this, XLA's fused add beats kernel overhead


def _add_kernel(a_ref, b_ref, o_ref):
    # Blocks may have size-1 dims (fused broadcast) and/or different dtypes (fused
    # promotion); jnp broadcasting + promotion inside the kernel handles both, and the
    # extra VPU work rides free under the DMA-bound pipeline.
    o_ref[...] = (a_ref[...] + b_ref[...]).astype(o_ref.dtype)


def _cdiv(a, b):
    return -(-a // b)


def _sublane_multiple(itemsize):
    # Packed-sublane row granularity: f32 -> 8, bf16 -> 16, int8/fp8 -> 32.
    return max(8, 32 // max(1, itemsize))


@functools.lru_cache(maxsize=None)
def _vmem_limit_bytes():
    # 3 arrays x 2 pipeline buffers x ~4 MiB blocks ~= 24 MiB (+ lane-padding slack).
    # Generation-aware cap: v5e/v6e have 128 MiB physical VMEM, v7x only 64 MiB per TC.
    try:
        cap = int(pltpu.get_tpu_info().vmem_capacity_bytes)
    except Exception:  # pragma: no cover - older jax / non-TPU tracing
        cap = 64 * 1024 * 1024
    return max(32 * 1024 * 1024, min(3 * cap // 4, 64 * 1024 * 1024))


def _pick_width(n):
    """Widest slab width dividing n: lane-aligned multiples of 128 first, then any divisor
    (a block whose last dim equals the full array dim is always legal -> no pad copy)."""
    for w in range(_MAX_WIDTH, _LANE - 1, -_LANE):
        if n % w == 0:
            return w
    for w in range(_MAX_WIDTH, 7, -1):
        if n % w == 0:
            return w
    return None


def _choose_blocks(rows, cols, itemsize, sublane):
    """Pick (block_rows, block_cols) targeting ~_TARGET_BLOCK_BYTES of lane-padded VMEM."""
    padded_cols = _cdiv(cols, _LANE) * _LANE
    row_bytes = padded_cols * itemsize

    if row_bytes * sublane > _TARGET_BLOCK_BYTES:
        # Very wide rows: tile the column dimension too (multiples of 128 -> masked edge).
        block_cols = max(_LANE,
                         (_TARGET_BLOCK_BYTES // (sublane * itemsize)) // _LANE * _LANE)
        block_cols = cols if block_cols >= cols else block_cols
        block_rows = rows if rows < sublane else sublane
    else:
        block_cols = cols
        block_rows = max(sublane, (_TARGET_BLOCK_BYTES // row_bytes) // sublane * sublane)
        block_rows = min(block_rows, rows)

    # v7x has 2 TensorCores per chip: never collapse a splittable tensor to 1 grid step.
    if _cdiv(rows, block_rows) * _cdiv(cols, block_cols) == 1:
        if rows > sublane:
            block_rows = _cdiv((rows + 1) // 2, sublane) * sublane
        elif cols > 2 * _LANE and block_cols == cols:
            half_c = _cdiv((cols + 1) // 2, _LANE) * _LANE
            if half_c < cols:
                block_cols = half_c
    return block_rows, block_cols


def _launch_add_2d(a2, b2, rows, cols, out_dtype, flops):
    """pallas_call over a 2-D output (rows, cols); operand dims may be 1 (fused broadcast)."""
    out_itemsize = jnp.dtype(out_dtype).itemsize
    itemsize = max(a2.dtype.itemsize, b2.dtype.itemsize, out_itemsize)
    sublane = max(_sublane_multiple(a2.dtype.itemsize),
                  _sublane_multiple(b2.dtype.itemsize),
                  _sublane_multiple(out_itemsize))
    block_rows, block_cols = _choose_blocks(rows, cols, itemsize, sublane)
    grid = (_cdiv(rows, block_rows), _cdiv(cols, block_cols))

    def spec_for(arr):
        r, c = arr.shape
        row_full = (r == rows)
        col_full = (c == cols)
        br = block_rows if row_full else 1
        bc = block_cols if col_full else 1

        def idx(i, j, _rf=row_full, _cf=col_full):
            return (i if _rf else 0, j if _cf else 0)

        return pl.BlockSpec((br, bc), idx)

    bytes_accessed = (a2.size * a2.dtype.itemsize + b2.size * b2.dtype.itemsize
                      + rows * cols * out_itemsize)
    return pl.pallas_call(
        _add_kernel,
        out_shape=jax.ShapeDtypeStruct((rows, cols), out_dtype),
        grid_spec=pl.GridSpec(
            grid=grid,
            in_specs=[spec_for(a2), spec_for(b2)],
            out_specs=pl.BlockSpec((block_rows, block_cols), lambda i, j: (i, j)),
        ),
        compiler_params=pltpu.CompilerParams(
            dimension_semantics=("parallel", "parallel"),
            vmem_limit_bytes=_vmem_limit_bytes(),
        ),
        cost_estimate=pl.CostEstimate(
            flops=flops, transcendentals=0, bytes_accessed=int(bytes_accessed)),
    )(a2, b2)


def _same_shape_add(x, y, out_shape, out_dtype, n):
    width = _pick_width(n)
    if width is None:
        # TODO(synk): element counts with no divisor in [8, 8192] (huge primes) fall back
        # to the XLA fused add instead of paying a pad + slice round trip over HBM.
        return jnp.add(x, y).astype(out_dtype)
    rows = n // width
    out2 = _launch_add_2d(x.reshape(rows, width), y.reshape(rows, width),
                          rows, width, out_dtype, n)
    return out2.reshape(out_shape)


def pallas_add(input1, input2):
    """Elementwise add with NumPy/PyTorch broadcasting semantics (== torch.add).

    NOTE: dtype promotion follows jnp.result_type, which can diverge from torch for mixed
    Python-scalar / int64 inputs (JAX defaults to 32-bit); torch.add's `alpha` kwarg is
    not part of the onnx2pytorch Add op and is not supported.
    """
    a = jnp.asarray(input1)
    b = jnp.asarray(input2)
    out_shape = tuple(jnp.broadcast_shapes(a.shape, b.shape))
    out_dtype = jnp.result_type(input1, input2)
    n = math.prod(out_shape)

    if n == 0:
        return jnp.zeros(out_shape, out_dtype)
    if n <= _SMALL_N:
        # Tiny adds: fixed pallas_call + grid-step overhead dominates; XLA wins.
        return jnp.add(a, b).astype(out_dtype)

    rank = len(out_shape)
    a_sh = (1,) * (rank - a.ndim) + tuple(a.shape)
    b_sh = (1,) * (rank - b.ndim) + tuple(b.shape)
    a_bcast = a_sh != out_shape
    b_bcast = b_sh != out_shape

    if not a_bcast and not b_bcast:
        return _same_shape_add(a, b, out_shape, out_dtype, n)

    if a_bcast and b_bcast:
        # TODO(synk): fuse two-sided broadcasting; materialize both operands for now.
        return _same_shape_add(jnp.broadcast_to(a, out_shape),
                               jnp.broadcast_to(b, out_shape), out_shape, out_dtype, n)

    # Exactly one operand broadcasts (add is commutative, so operand order is free).
    big, small = (b, a) if a_bcast else (a, b)
    small_sh = a_sh if a_bcast else b_sh

    if small.size == 1:
        # Scalar operand: pass it as a (1, 1) block and broadcast on the VPU in-kernel.
        width = _pick_width(n)
        if width is None:
            return jnp.add(a, b).astype(out_dtype)
        rows = n // width
        out2 = _launch_add_2d(big.reshape(rows, width), small.reshape(1, 1),
                              rows, width, out_dtype, n)
        return out2.reshape(out_shape)

    # Leading-dim broadcast (bias over trailing dims): (outer, inner) + (1, inner).
    q = rank
    while q > 0 and small_sh[q - 1] == out_shape[q - 1]:
        q -= 1
    if all(d == 1 for d in small_sh[:q]):
        inner = math.prod(out_shape[q:])
        if inner >= _LANE:
            outer = n // inner
            out2 = _launch_add_2d(big.reshape(outer, inner), small.reshape(1, inner),
                                  outer, inner, out_dtype, n)
            return out2.reshape(out_shape)

    # Trailing-dim broadcast (per-row value): (outer, inner) + (outer, 1).
    p = 0
    while p < rank and small_sh[p] == out_shape[p]:
        p += 1
    if all(d == 1 for d in small_sh[p:]):
        outer = math.prod(out_shape[:p])
        inner = n // outer
        if inner >= _LANE:
            out2 = _launch_add_2d(big.reshape(outer, inner), small.reshape(outer, 1),
                                  outer, inner, out_dtype, n)
            return out2.reshape(out_shape)

    # TODO(synk): fuse interleaved broadcast patterns (e.g. (1,C,1,W)) via an N-D grid;
    # for now materialize the broadcast operand and reuse the same-shape slab path.
    return _same_shape_add(big, jnp.broadcast_to(small, out_shape),
                           out_shape, out_dtype, n)


if __name__ == "__main__":
    key = jax.random.PRNGKey(0)
    keys = jax.random.split(key, 8)

    x = jax.random.normal(keys[0], (2, 4, 64, 64), dtype=jnp.float32)
    y = jax.random.normal(keys[1], (2, 4, 64, 64), dtype=jnp.float32)

    # Same-shape lane-aligned slab path.
    out = pallas_add(x, y)
    jax.block_until_ready(out)
    assert out.shape == (2, 4, 64, 64)
    assert jnp.allclose(out, x + y, atol=1e-6), "same-shape add mismatch"

    # Fused leading-dim broadcast (bias over trailing dims), no materialization.
    bias = jax.random.normal(keys[2], (4, 64, 64), dtype=jnp.float32)
    out_b = pallas_add(x, bias)
    jax.block_until_ready(out_b)
    assert out_b.shape == (2, 4, 64, 64)
    assert jnp.allclose(out_b, x + bias, atol=1e-6), "leading-broadcast add mismatch"

    # Fused trailing-dim broadcast (per-row value).
    u = jax.random.normal(keys[3], (2, 16, 512), dtype=jnp.float32)
    col = jax.random.normal(keys[4], (2, 16, 1), dtype=jnp.float32)
    out_c = pallas_add(u, col)
    jax.block_until_ready(out_c)
    assert out_c.shape == (2, 16, 512)
    assert jnp.allclose(out_c, u + col, atol=1e-6), "trailing-broadcast add mismatch"

    # Fused dtype promotion (bf16 + f32 -> f32 inside the kernel, no wrapper cast pass).
    y16 = y.astype(jnp.bfloat16)
    out_m = pallas_add(x, y16)
    jax.block_until_ready(out_m)
    assert out_m.dtype == jnp.float32
    assert jnp.allclose(out_m, x + y16, atol=1e-6), "mixed-dtype add mismatch"

    # Fused Python-scalar operand (passed as a (1,1) block).
    out_s = pallas_add(x, 2.5)
    jax.block_until_ready(out_s)
    assert jnp.allclose(out_s, x + 2.5, atol=1e-6), "scalar add mismatch"

    # Interleaved broadcast pattern (materialize fallback + slab kernel).
    z = jax.random.normal(keys[5], (1, 4, 1, 64), dtype=jnp.float32)
    out_i = pallas_add(x, z)
    jax.block_until_ready(out_i)
    assert jnp.allclose(out_i, x + z, atol=1e-6), "interleaved-broadcast add mismatch"

    # Larger aligned case exercising a multi-step grid (>= 2 steps for v7x dual-TC).
    pbig = jax.random.normal(keys[6], (4, 128, 1024), dtype=jnp.float32)
    qbig = jax.random.normal(keys[7], (4, 128, 1024), dtype=jnp.float32)
    out_p = pallas_add(pbig, qbig)
    jax.block_until_ready(out_p)
    assert jnp.allclose(out_p, pbig + qbig, atol=1e-6), "multi-block add mismatch"

    # Tiny / oddly-shaped tensors take the XLA fast path.
    t1 = jax.random.normal(keys[0], (2, 3, 5, 7), dtype=jnp.float32)
    t2 = jax.random.normal(keys[1], (2, 3, 5, 7), dtype=jnp.float32)
    out_t = pallas_add(t1, t2)
    jax.block_until_ready(out_t)
    assert jnp.allclose(out_t, t1 + t2, atol=1e-6), "small-tensor add mismatch"

    print("KERNEL_OK")
</pallas_src>

<mosaic_0001>
module attributes {stable_mosaic.version = 11 : i64} {
  func.func @_add_kernel(%arg0: i32, %arg1: i32, %arg2: memref<4x4096xf32, #tpu.memory_space<vmem>>, %arg3: memref<4x4096xf32, #tpu.memory_space<vmem>>, %arg4: memref<4x4096xf32, #tpu.memory_space<vmem>>) attributes {dimension_semantics = [#tpu.dimension_semantics<parallel>, #tpu.dimension_semantics<parallel>], iteration_bounds = array<i64: 1, 2>, scalar_prefetch = 0 : i64, scratch_operands = 0 : i64, tpu.core_type = #tpu.core_type<tc>, window_params = [{transform_indices = @transform_0, window_bounds = array<i64: 4, 4096>}, {transform_indices = @transform_1, window_bounds = array<i64: 4, 4096>}, {transform_indices = @transform_2, window_bounds = array<i64: 4, 4096>}]} {
    %c0 = arith.constant 0 : index
    %c0_0 = arith.constant 0 : index
    %0 = vector.load %arg2[%c0, %c0_0] : memref<4x4096xf32, #tpu.memory_space<vmem>>, vector<4x4096xf32>
    %c0_1 = arith.constant 0 : index
    %c0_2 = arith.constant 0 : index
    %1 = vector.load %arg3[%c0_1, %c0_2] : memref<4x4096xf32, #tpu.memory_space<vmem>>, vector<4x4096xf32>
    %2 = arith.addf %0, %1 : vector<4x4096xf32>
    %c0_3 = arith.constant 0 : index
    %c0_4 = arith.constant 0 : index
    %3 = vector.load %arg4[%c0_3, %c0_4] : memref<4x4096xf32, #tpu.memory_space<vmem>>, vector<4x4096xf32>
    tpu.vector_store %arg4[%c0_3, %c0_4], %2 {strides = array<i32>} : memref<4x4096xf32, #tpu.memory_space<vmem>>, vector<4x4096xf32>,
    return
  }
  func.func @transform_0(%arg0: i32, %arg1: i32) -> (i32, i32) {
    %c0_i32 = arith.constant 0 : i32
    return %arg0, %arg1 : i32, i32
  }
  func.func @transform_1(%arg0: i32, %arg1: i32) -> (i32, i32) {
    %c0_i32 = arith.constant 0 : i32
    return %arg0, %arg1 : i32, i32
  }
  func.func @transform_2(%arg0: i32, %arg1: i32) -> (i32, i32) {
    %c0_i32 = arith.constant 0 : i32
    return %arg0, %arg1 : i32, i32
  }
}

</mosaic_0001>

<llo_original>
// kernel: tpu_custom_call.1
$region0: #{tpu_custom_call.1}
  #allocation0 [shape = 'u32[]', space=smem, size = 0x4, offset = 0x4, fixed_abs, tag = 'smem constant byte address 0x4 - core index']
  #allocation1 [shape = 'u32[144,128]{1,0:T(1,128)}', space=vmem, size = 0x12000, scoped, tag = 'internal scratch']
  %s0 = inlined_call_operand.hbm [shape: f32[4,8192], index: 0, kind: input, shape index: {}]
  %s1 = inlined_call_operand.hbm [shape: f32[4,8192], index: 1, kind: input, shape index: {}]
  %s2 = inlined_call_operand.hbm [shape: f32[4,8192], index: 2, kind: output, shape index: {}]
  %s3 = sld [smem:[#allocation0]]
  $region49: #{tpu_custom_call.1} parent=0
    _
  %s5 = ssub.s32 1, %s3
  %s6 = scalar_select 0, %s5, %s3
  $region1: #{tpu_custom_call.1} parent=0
    #allocation2 [shape = 'u8[131072]{0}', space=vmem, size = 0x20000, scoped, tag = 'input window, operand 0']
    #allocation3 [shape = 's32[2]{0}', space=sflag, size = 0x8, scoped, tag = 'scoped memory for tpu_custom_call.1']
    #allocation4 [shape = 's32[2]{0}', space=sflag, size = 0x8, scoped, tag = 'scoped memory for tpu_custom_call.1']
    #allocation5 [shape = 'u8[131072]{0}', space=vmem, size = 0x20000, scoped, tag = 'input window, operand 1']
    #allocation6 [shape = 's32[2]{0}', space=sflag, size = 0x8, scoped, tag = 'scoped memory for tpu_custom_call.1']
    #allocation7 [shape = 'u8[131072]{0}', space=vmem, size = 0x20000, scoped, tag = 'output window, operand 0']
    %7 = vsyncpa [#allocation3], 0
    %s8 = scalar_lea.sflag [#allocation3], 1
    %9 = vsyncpa %s8, 0
    %10 = vsyncpa [#allocation6], 0
    %s11 = scalar_lea.sflag [#allocation6], 1
    %12 = vsyncpa %s11, 0
    %13 = vsyncpa [#allocation4], 0
    %s14 = scalar_lea.sflag [#allocation4], 1
    %15 = vsyncpa %s14, 0
    loop: start=0, step=1, limit=4
    $region2: #{tpu_custom_call.1} parent=1 // loop_pre_header
      _
    $region3: #{tpu_custom_call.1} parent=1 // loop_header
      %s17 = sphi 0, %s21
      %p18 = scmp.ge.s32.totalorder %s17, 4
      %s24 = sphi 0, %s36
      %s25 = sphi 0, %s32
      %s26 = sphi 0, %s24
      %s27 = sphi 0, %s25
      %s28 = sphi 0, %s26
      %s29 = sphi 0, %s27
      %s41 = sphi 0, %s43
      %s44 = sphi 0, %s41
      %s45 = sphi 0, %s44
      %s61 = sphi 0, %s45
      %s69 = sphi 0, %s71
      %s72 = sphi 0, %s69
      %s73 = sphi 0, %s72
      %s89 = sphi 0, %s73
      %s97 = sphi 0, %s99
      %s100 = sphi 0, %s97
      %s101 = sphi 0, %s100
      %s117 = sphi 0, %s101
    $region4: #{tpu_custom_call.1} parent=1 // loop_header_branch
      %20 = sbr.rel (%p18) target = $region8
    $region5: #{tpu_custom_call.1} parent=1 // loop_body
      %s22 = ssub.s32 %s17, 1
      %s23 = ssub.s32 %s17, 2
      %s30 = sadd.s32 1, %s25
      %p31 = scmp.ge.s32.totalorder %s30, 2
      %s32 = scalar_select %p31, 0, %s30
      %s33 = sadd.s32 1, %s24
      %s34 = scalar_select %p31, %s33, %s24
      %p35 = scmp.ge.s32.totalorder %s34, 1
      %s36 = scalar_select %p35, 0, %s34
      %s37 = ssub.s32 %s24, %s36
      %s38 = ssub.s32 %s25, %s32
      %s39 = sor.u32 %s37, %s38
      %p40 = scmp.eq.s32.totalorder %s39, 0
      %s42 = sadd.s32 %s41, 1
      %s43 = scalar_select %p40, %s41, %s42
      %p46 = pneg %p40
      %p47 = scmp.eq.s32.totalorder %s17, 1
      %p48 = por %p46, %p47
      %p49 = scmp.ne.s32.totalorder %s41, %s44
      %p50 = scmp.eq.s32.totalorder %s17, 0
      %p51 = por %p49, %p50
      %p52 = scmp.ne.s32.totalorder %s41, %s44
      %p53 = scmp.eq.s32.totalorder %s22, 1
      %p54 = por %p52, %p53
      %p55 = scmp.ne.s32.totalorder %s44, %s45
      %p56 = scmp.eq.s32.totalorder %s22, 0
      %p57 = por %p55, %p56
      %p58 = scmp.ne.s32.totalorder %s44, %s45
      %p59 = scmp.eq.s32.totalorder %s23, 1
      %p60 = por %p58, %p59
      %p62 = scmp.ne.s32.totalorder %s45, %s61
      %p63 = scmp.eq.s32.totalorder %s23, 0
      %p64 = por %p62, %p63
      %s65 = ssub.s32 %s24, %s36
      %s66 = ssub.s32 %s25, %s32
      %s67 = sor.u32 %s65, %s66
      %p68 = scmp.eq.s32.totalorder %s67, 0
      %s70 = sadd.s32 %s69, 1
      %s71 = scalar_select %p68, %s69, %s70
      %p74 = pneg %p68
      %p75 = scmp.eq.s32.totalorder %s17, 1
      %p76 = por %p74, %p75
      %p77 = scmp.ne.s32.totalorder %s69, %s72
      %p78 = scmp.eq.s32.totalorder %s17, 0
      %p79 = por %p77, %p78
      %p80 = scmp.ne.s32.totalorder %s69, %s72
      %p81 = scmp.eq.s32.totalorder %s22, 1
      %p82 = por %p80, %p81
      %p83 = scmp.ne.s32.totalorder %s72, %s73
      %p84 = scmp.eq.s32.totalorder %s22, 0
      %p85 = por %p83, %p84
      %p86 = scmp.ne.s32.totalorder %s72, %s73
      %p87 = scmp.eq.s32.totalorder %s23, 1
      %p88 = por %p86, %p87
      %p90 = scmp.ne.s32.totalorder %s73, %s89
      %p91 = scmp.eq.s32.totalorder %s23, 0
      %p92 = por %p90, %p91
      %s93 = ssub.s32 %s24, %s36
      %s94 = ssub.s32 %s25, %s32
      %s95 = sor.u32 %s93, %s94
      %p96 = scmp.eq.s32.totalorder %s95, 0
      %s98 = sadd.s32 %s97, 1
      %s99 = scalar_select %p96, %s97, %s98
      %p102 = pneg %p96
      %p103 = scmp.eq.s32.totalorder %s17, 1
      %p104 = por %p102, %p103
      %p105 = scmp.ne.s32.totalorder %s97, %s100
      %p106 = scmp.eq.s32.totalorder %s17, 0
      %p107 = por %p105, %p106
      %p108 = scmp.ne.s32.totalorder %s97, %s100
      %p109 = scmp.eq.s32.totalorder %s22, 1
      %p110 = por %p108, %p109
      %p111 = scmp.ne.s32.totalorder %s100, %s101
      %p112 = scmp.eq.s32.totalorder %s22, 0
      %p113 = por %p111, %p112
      %p114 = scmp.ne.s32.totalorder %s100, %s101
      %p115 = scmp.eq.s32.totalorder %s23, 1
      %p116 = por %p114, %p115
      %p118 = scmp.ne.s32.totalorder %s101, %s117
      %p119 = scmp.eq.s32.totalorder %s23, 0
      %p120 = por %p118, %p119
      %p121 = scmp.le.s32.totalorder 1, %s17
      %p122 = scmp.lt.s32.totalorder %s17, 3
      %p123 = pnand %p121, %p122
      %p124 = pneg %p123
      // Predicated region
      $region9: #{tpu_custom_call.1} parent=5 // pred_check
        _
      $region10: #{tpu_custom_call.1} parent=5 // pred_check_branch
        %126 = sbr.rel (%p123) target = $region12
      $region11: #{tpu_custom_call.1} parent=5 // pred_region
        %s127 = ssub.s32 %s17, 1
      $region12: #{tpu_custom_call.1} parent=5 // pred_fallthru
        _
      %p128 = scmp.lt.s32.totalorder %s17, 2
      // Predicated region
      $region13: #{tpu_custom_call.1} parent=5 // pred_check
        %p129 = pneg %p128
      $region14: #{tpu_custom_call.1} parent=5 // pred_check_branch
        %131 = sbr.rel (%p129) target = $region16
      $region15: #{tpu_custom_call.1} parent=5 // pred_region
        // Predicated region
        $region17: #{tpu_custom_call.1} parent=15 // pred_check
          %p132 = pneg %p51
        $region18: #{tpu_custom_call.1} parent=15 // pred_check_branch
          %134 = sbr.rel (%p132) target = $region20
        $region19: #{tpu_custom_call.1} parent=15 // pred_region
          %s135 = sand.u32 %s41, 1
          %s136 = scalar_lea.sflag [#allocation3], %s135
          %s137 = sand.u32 %s41, 1
          %s138 = smul.addr %s137, 128
          %s139 = scalar_lea.vmem [#allocation2], %s138
          %s140 = smul.u32 32, %s25
          %s142 = ssub.s32 2048, 2048
          %143 = vsyncadd %s136, %s142
          %s144 = smul.addr %s24, 64
          %s145 = sadd.s32 %s140, %s144
          %s146 = smul.addr %s145, 64
          %s147 = scalar_lea.hbm %s0, %s146
          %s149 = sshll.u32 %s139, 4
          %s150 = int_to_ptr.vmem [resolvable:$true] %s149
          %152 = dma.hbm_to_vmem [thread:$0]  %s147, 2048, %s150, %s136
        $region20: #{tpu_custom_call.1} parent=15 // pred_fallthru
          _
        // Predicated region
        $region21: #{tpu_custom_call.1} parent=15 // pred_check
          %p153 = pneg %p79
        $region22: #{tpu_custom_call.1} parent=15 // pred_check_branch
          %155 = sbr.rel (%p153) target = $region24
        $region23: #{tpu_custom_call.1} parent=15 // pred_region
          %s156 = sand.u32 %s69, 1
          %s157 = scalar_lea.sflag [#allocation6], %s156
          %s158 = sand.u32 %s69, 1
          %s159 = smul.addr %s158, 128
          %s160 = scalar_lea.vmem [#allocation5], %s159
          %s161 = smul.u32 32, %s25
          %s163 = ssub.s32 2048, 2048
          %164 = vsyncadd %s157, %s163
          %s165 = smul.addr %s24, 64
          %s166 = sadd.s32 %s161, %s165
          %s167 = smul.addr %s166, 64
          %s168 = scalar_lea.hbm %s1, %s167
          %s170 = sshll.u32 %s160, 4
          %s171 = int_to_ptr.vmem [resolvable:$true] %s170
          %173 = dma.hbm_to_vmem [thread:$0]  %s168, 2048, %s171, %s157
        $region24: #{tpu_custom_call.1} parent=15 // pred_fallthru
          _
      $region16: #{tpu_custom_call.1} parent=5 // pred_fallthru
        _
      %p174 = scmp.le.s32.totalorder 1, %s17
      %p175 = scmp.lt.s32.totalorder %s17, 3
      %p176 = pnand %p174, %p175
      %p177 = pneg %p176
      // Predicated region
      $region25: #{tpu_custom_call.1} parent=5 // pred_check
        _
      $region26: #{tpu_custom_call.1} parent=5 // pred_check_branch
        %179 = sbr.rel (%p176) target = $region28
      $region27: #{tpu_custom_call.1} parent=5 // pred_region
        %s180 = ssub.s32 %s17, 1
        %s181 = sand.u32 %s44, 1
        %s182 = scalar_lea.sflag [#allocation3], %s181
        %s183 = sand.u32 %s44, 1
        %s184 = smul.addr %s183, 128
        %s185 = scalar_lea.vmem [#allocation2], %s184
        // Predicated region
        $region29: #{tpu_custom_call.1} parent=27 // pred_check
          %p186 = pneg %p57
        $region30: #{tpu_custom_call.1} parent=27 // pred_check_branch
          %188 = sbr.rel (%p186) target = $region32
        $region31: #{tpu_custom_call.1} parent=27 // pred_region
          %189 = dma.done %s182, 2048
        $region32: #{tpu_custom_call.1} parent=27 // pred_fallthru
          _
        %s190 = sand.u32 %s72, 1
        %s191 = scalar_lea.sflag [#allocation6], %s190
        %s192 = sand.u32 %s72, 1
        %s193 = smul.addr %s192, 128
        %s194 = scalar_lea.vmem [#allocation5], %s193
        // Predicated region
        $region33: #{tpu_custom_call.1} parent=27 // pred_check
          %p195 = pneg %p85
        $region34: #{tpu_custom_call.1} parent=27 // pred_check_branch
          %197 = sbr.rel (%p195) target = $region36
        $region35: #{tpu_custom_call.1} parent=27 // pred_region
          %198 = dma.done %s191, 2048
        $region36: #{tpu_custom_call.1} parent=27 // pred_fallthru
          _
        %s199 = sand.u32 %s44, 1
        %s200 = scalar_lea.sflag [#allocation3], %s199
        %s201 = sand.u32 %s44, 1
        %s202 = smul.addr %s201, 128
        %s203 = scalar_lea.vmem [#allocation2], %s202
        %p204 = pneg %p57
        %p205 = pneg %p54
        %s206 = sand.u32 %s72, 1
        %s207 = scalar_lea.sflag [#allocation6], %s206
        %s208 = sand.u32 %s72, 1
        %s209 = smul.addr %s208, 128
        %s210 = scalar_lea.vmem [#allocation5], %s209
        %p211 = pneg %p85
        %p212 = pneg %p82
        %p213 = pneg %p113
        %p214 = pneg %p110
        %s215 = sand.u32 %s100, 1
        %s216 = scalar_lea.sflag [#allocation4], %s215
        %s217 = sand.u32 %s100, 1
        %s218 = smul.addr %s217, 128
        %s219 = scalar_lea.vmem [#allocation7], %s218
        %s220 = smul.u32 32, %s27
        %s221 = smul.u32 32, %s27
        %s222 = smul.u32 32, %s27
        %v223 = vld [vmem:[%s185] sm:$0xff]
        %v224 = vld [vmem:[%s185 + $0x8] sm:$0xff]
        %v225 = vld [vmem:[%s185 + $0x10] sm:$0xff]
        %v226 = vld [vmem:[%s185 + $0x18] sm:$0xff]
        %v227 = vld [vmem:[%s185 + $0x20] sm:$0xff]
        %v228 = vld [vmem:[%s185 + $0x28] sm:$0xff]
        %v229 = vld [vmem:[%s185 + $0x30] sm:$0xff]
        %v230 = vld [vmem:[%s185 + $0x38] sm:$0xff]
        %v231 = vld [vmem:[%s185 + $0x40] sm:$0xff]
        %v232 = vld [vmem:[%s185 + $0x48] sm:$0xff]
        %v233 = vld [vmem:[%s185 + $0x50] sm:$0xff]
        %v234 = vld [vmem:[%s185 + $0x58] sm:$0xff]
        %v235 = vld [vmem:[%s185 + $0x60] sm:$0xff]
        %v236 = vld [vmem:[%s185 + $0x68] sm:$0xff]
        %v237 = vld [vmem:[%s185 + $0x70] sm:$0xff]
        %v238 = vld [vmem:[%s185 + $0x78] sm:$0xff]
        %v239 = vld [vmem:[%s194] sm:$0xff]
        %v240 = vld [vmem:[%s194 + $0x8] sm:$0xff]
        %v241 = vld [vmem:[%s194 + $0x10] sm:$0xff]
        %v242 = vld [vmem:[%s194 + $0x18] sm:$0xff]
        %v243 = vld [vmem:[%s194 + $0x20] sm:$0xff]
        %v244 = vld [vmem:[%s194 + $0x28] sm:$0xff]
        %v245 = vld [vmem:[%s194 + $0x30] sm:$0xff]
        %v246 = vld [vmem:[%s194 + $0x38] sm:$0xff]
        %v247 = vld [vmem:[%s194 + $0x40] sm:$0xff]
        %v248 = vld [vmem:[%s194 + $0x48] sm:$0xff]
        %v249 = vld [vmem:[%s194 + $0x50] sm:$0xff]
        %v250 = vld [vmem:[%s194 + $0x58] sm:$0xff]
        %v251 = vld [vmem:[%s194 + $0x60] sm:$0xff]
        %v252 = vld [vmem:[%s194 + $0x68] sm:$0xff]
        %v253 = vld [vmem:[%s194 + $0x70] sm:$0xff]
        %v254 = vld [vmem:[%s194 + $0x78] sm:$0xff]
        %v255 = vadd.f32 %v223, %v239
        %v256 = vadd.f32 %v224, %v240
        %v257 = vadd.f32 %v225, %v241
        %v258 = vadd.f32 %v226, %v242
        %v259 = vadd.f32 %v227, %v243
        %v260 = vadd.f32 %v228, %v244
        %v261 = vadd.f32 %v229, %v245
        %v262 = vadd.f32 %v230, %v246
        %v263 = vadd.f32 %v231, %v247
        %v264 = vadd.f32 %v232, %v248
        %v265 = vadd.f32 %v233, %v249
        %v266 = vadd.f32 %v234, %v250
        %v267 = vadd.f32 %v235, %v251
        %v268 = vadd.f32 %v236, %v252
        %v269 = vadd.f32 %v237, %v253
        %v270 = vadd.f32 %v238, %v254
        %271 = vst [vmem:[%s219] sm:$0xff] %v255
        %272 = vst [vmem:[%s219 + $0x8] sm:$0xff] %v256
        %273 = vst [vmem:[%s219 + $0x10] sm:$0xff] %v257
        %274 = vst [vmem:[%s219 + $0x18] sm:$0xff] %v258
        %275 = vst [vmem:[%s219 + $0x20] sm:$0xff] %v259
        %276 = vst [vmem:[%s219 + $0x28] sm:$0xff] %v260
        %277 = vst [vmem:[%s219 + $0x30] sm:$0xff] %v261
        %278 = vst [vmem:[%s219 + $0x38] sm:$0xff] %v262
        %279 = vst [vmem:[%s219 + $0x40] sm:$0xff] %v263
        %280 = vst [vmem:[%s219 + $0x48] sm:$0xff] %v264
        %281 = vst [vmem:[%s219 + $0x50] sm:$0xff] %v265
        %282 = vst [vmem:[%s219 + $0x58] sm:$0xff] %v266
        %283 = vst [vmem:[%s219 + $0x60] sm:$0xff] %v267
        %284 = vst [vmem:[%s219 + $0x68] sm:$0xff] %v268
        %285 = vst [vmem:[%s219 + $0x70] sm:$0xff] %v269
        %286 = vst [vmem:[%s219 + $0x78] sm:$0xff] %v270
        %s287 = sand.u32 %s100, 1
        %s288 = scalar_lea.sflag [#allocation4], %s287
        %s289 = sand.u32 %s100, 1
        %s290 = smul.addr %s289, 128
        %s291 = scalar_lea.vmem [#allocation7], %s290
        // Predicated region
        $region37: #{tpu_custom_call.1} parent=27 // pred_check
          %p292 = pneg %p110
        $region38: #{tpu_custom_call.1} parent=27 // pred_check_branch
          %294 = sbr.rel (%p292) target = $region40
        $region39: #{tpu_custom_call.1} parent=27 // pred_region
          %s295 = smul.u32 32, %s27
          %s297 = ssub.s32 2048, 2048
          %298 = vsyncadd %s288, %s297
          %s299 = smul.addr %s26, 64
          %s300 = sadd.s32 %s295, %s299
          %s301 = smul.addr %s300, 64
          %s302 = scalar_lea.hbm %s2, %s301
          %s304 = sshll.u32 %s291, 4
          %s305 = int_to_ptr.vmem [resolvable:$true] %s304
          %307 = dma.vmem_to_hbm [thread:$0]  %s305, 2048, %s302, %s288
        $region40: #{tpu_custom_call.1} parent=27 // pred_fallthru
          _
      $region28: #{tpu_custom_call.1} parent=5 // pred_fallthru
        _
      %p308 = scmp.le.s32.totalorder 2, %s17
      // Predicated region
      $region41: #{tpu_custom_call.1} parent=5 // pred_check
        %p309 = pneg %p308
      $region42: #{tpu_custom_call.1} parent=5 // pred_check_branch
        %311 = sbr.rel (%p309) target = $region44
      $region43: #{tpu_custom_call.1} parent=5 // pred_region
        %s312 = ssub.s32 %s17, 2
        // Predicated region
        $region45: #{tpu_custom_call.1} parent=43 // pred_check
          %p313 = pneg %p116
        $region46: #{tpu_custom_call.1} parent=43 // pred_check_branch
          %315 = sbr.rel (%p313) target = $region48
        $region47: #{tpu_custom_call.1} parent=43 // pred_region
          %s316 = sand.u32 %s101, 1
          %s317 = scalar_lea.sflag [#allocation4], %s316
          %s318 = sand.u32 %s101, 1
          %s319 = smul.addr %s318, 128
          %s320 = scalar_lea.vmem [#allocation7], %s319
          %321 = dma.done %s317, 2048
        $region48: #{tpu_custom_call.1} parent=43 // pred_fallthru
          _
      $region44: #{tpu_custom_call.1} parent=5 // pred_fallthru
        _
    $region6: #{tpu_custom_call.1} parent=1 // loop_footer
      %s21 = sadd.s32 1, %s17
    $region7: #{tpu_custom_call.1} parent=1 // loop_footer_branch
      %16 = sbr.rel target = $region3
    $region8: #{tpu_custom_call.1} parent=1 // loop_exit
      _
    %322 = vsyncpa [#allocation3], 1
    %s323 = scalar_lea.sflag [#allocation3], 1
    %324 = vsyncpa %s323, 1
    %325 = vsyncpa [#allocation6], 1
    %s326 = scalar_lea.sflag [#allocation6], 1
    %327 = vsyncpa %s326, 1
    %328 = vsyncpa [#allocation4], 1
    %s329 = scalar_lea.sflag [#allocation4], 1
    %330 = vsyncpa %s329, 1

</llo_original>
